<compile_context>
chip_gen: v7x
topology: tpu7x:2x2x1
jax: 0.10.0
libtpu: 0.0.40
codegen_flags: <defaults>
</compile_context>

<pallas_src>
import numpy as np
import jax
import jax.numpy as jnp
from jax import lax
from jax.experimental import pallas as pl
from jax.experimental.pallas import tpu as pltpu


def _round_up(x, m):
    return (x + m - 1) // m * m


# dot_general dimension numbers for "A @ B.T" (contract dim 1 of both sides)
_NT = (((1,), (1,)), ((), ()))


# ---------------------------------------------------------------------------
# Forward pass: one fused pallas_call (gather + Tucker reconstruction + head).
# ---------------------------------------------------------------------------
@jax.jit
def ml2_forward(params, u_idx, v_idx, w_idx):
    f32 = jnp.float32
    Uw, Vw, Ww = params["U"], params["V"], params["W"]
    U1w, V1w, W1w, G1 = params["U1"], params["V1"], params["W1"], params["G1"]

    B = u_idx.shape[0]
    S0, r0 = Uw.shape
    S1, r1 = Vw.shape
    S2, r2 = Ww.shape
    c0, c1, c2 = G1.shape
    G1_2d = G1.reshape(c0, c1 * c2)          # row-major mode-0 unfold (free)

    # ---- trace-time constants: selection matrices for the Kronecker algebra
    m = np.arange(r1 * r2)
    p = np.arange(c1 * c2)
    e_rv = (m[:, None] // r2 == np.arange(r1)[None, :]).astype(np.float32)  # (r1*r2, r1)
    e_cv = (p[None, :] // c2 == np.arange(c1)[:, None]).astype(np.float32)  # (c1, c1*c2)
    e_rw = (m[:, None] % r2 == np.arange(r2)[None, :]).astype(np.float32)   # (r1*r2, r2)
    e_cw = (p[None, :] % c2 == np.arange(c2)[:, None]).astype(np.float32)   # (c2, c1*c2)

    # ---- pack params + constants into one f32 slab -> a single DMA ----------
    slabs = [("U", Uw), ("V", Vw), ("W", Ww),
             ("U1", U1w), ("V1", V1w), ("W1", W1w), ("G1", G1_2d),
             ("e_rv", e_rv), ("e_cv", e_cv), ("e_rw", e_rw), ("e_cw", e_cw)]
    width = max(int(a.shape[1]) for _, a in slabs)
    layout, pieces, off = {}, [], 0
    for name, a in slabs:
        rows, cols = int(a.shape[0]), int(a.shape[1])
        layout[name] = (off, rows, cols)
        rp = _round_up(rows, 8)              # keep every slab 8-row aligned
        pieces.append(jnp.pad(jnp.asarray(a, f32),
                              ((0, rp - rows), (0, width - cols))))
        off += rp
    total_rows = off
    buf = jnp.concatenate(pieces, axis=0)                       # (total_rows, width)

    idx = jnp.stack([u_idx, v_idx, w_idx], axis=1).astype(jnp.int32)   # (B, 3)

    def kernel(idx_ref, buf_ref, out_ref):
        def slab(name):
            o, rows, cols = layout[name]
            return buf_ref[pl.ds(o, rows), pl.ds(0, cols)]      # static view

        idx_all = idx_ref[...]                                  # (B, 3) int32

        def gather(col, n_rows, table):
            # one-hot (B, n_rows) on the VPU, gathered with a single MXU dot.
            ids = idx_all[:, col:col + 1]                       # (B, 1)
            iota = lax.broadcasted_iota(jnp.int32, (B, n_rows), 1)
            sel = (iota == ids).astype(f32)
            return jnp.dot(sel, table, preferred_element_type=f32)

        u = gather(0, S0, slab("U"))                            # (B, r0)
        v = gather(1, S1, slab("V"))                            # (B, r1)
        w = gather(2, S2, slab("W"))                            # (B, r2)

        e_rv_k = slab("e_rv")    # [m, j] = (m // r2 == j)
        e_rw_k = slab("e_rw")    # [m, k] = (m %  r2 == k)

        # ---- Tucker reconstruction: G2d[i, j*r2+k] = G[i, j, k] (all 2-D) ---
        A = jnp.dot(slab("U1"), slab("G1"), preferred_element_type=f32)   # (r0, c1*c2)
        v_big = jnp.dot(jnp.dot(e_rv_k, slab("V1"), preferred_element_type=f32),
                        slab("e_cv"), preferred_element_type=f32)  # V1[m//r2, p//c2]
        w_big = jnp.dot(jnp.dot(e_rw_k, slab("W1"), preferred_element_type=f32),
                        slab("e_cw"), preferred_element_type=f32)  # W1[m%r2, p%c2]
        kron_vw = v_big * w_big                                    # kron(V1, W1)
        g2d = lax.dot_general(A, kron_vw, _NT, preferred_element_type=f32)  # (r0, r1*r2)

        # ---- head ------------------------------------------------------------
        x = jax.nn.sigmoid(jnp.dot(u, g2d, preferred_element_type=f32))     # (B, r1*r2)
        v_exp = lax.dot_general(v, e_rv_k, _NT, preferred_element_type=f32)  # v[n, m//r2]
        g_mat = jax.nn.sigmoid(jnp.dot(v_exp * x, e_rw_k,
                                       preferred_element_type=f32))          # (B, r2)
        y = w * g_mat
        ones_row = jnp.ones((1, r2), f32)
        out_ref[...] = lax.dot_general(ones_row, y, _NT,
                                       preferred_element_type=f32)           # (1, B)

    out = pl.pallas_call(
        kernel,
        out_shape=jax.ShapeDtypeStruct((1, B), jnp.float32),
        grid=(1,),
        in_specs=[
            pl.BlockSpec((B, 3), lambda i: (0, 0)),
            pl.BlockSpec((total_rows, width), lambda i: (0, 0)),
        ],
        out_specs=pl.BlockSpec((1, B), lambda i: (0, 0)),
        compiler_params=pltpu.CompilerParams(
            dimension_semantics=("arbitrary",)),
    )(idx, buf)

    return out[0]        # (B,) — matches torch.squeeze of the (B, 1, 1) bmm


# ---------------------------------------------------------------------------
# Pure-JAX reference (for correctness check).
# ---------------------------------------------------------------------------
def ml2_forward_ref(params, u_idx, v_idx, w_idx):
    U1w, V1w, W1w, G1 = params["U1"], params["V1"], params["W1"], params["G1"]
    hi = jax.lax.Precision.HIGHEST
    G = jnp.einsum("ia,jb,kc,abc->ijk", U1w, V1w, W1w, G1, precision=hi)
    u = params["U"][u_idx]
    v = params["V"][v_idx]
    w = params["W"][w_idx]
    d1, d2, d3 = U1w.shape[0], V1w.shape[0], W1w.shape[0]
    x = jax.nn.sigmoid(jnp.dot(u, G.reshape(d1, d2 * d3), precision=hi))
    x = x.reshape(-1, d2, d3)
    g_mat = jax.nn.sigmoid(jnp.einsum("nj,njk->nk", v, x, precision=hi))
    return jnp.sum(w * g_mat, axis=-1)


# ---------------------------------------------------------------------------
# Deterministic parameter construction (xavier-normal-like, padding row 0 = 0).
# ---------------------------------------------------------------------------
def make_params(key, shape, rank, core):
    def xavier_normal(k, n, m, zero_row0=True):
        std = (2.0 / (n + m)) ** 0.5
        wmat = jax.random.normal(k, (n, m), jnp.float32) * std
        if zero_row0:
            wmat = wmat.at[0].set(0.0)   # mimic nn.Embedding(padding_idx=0)
        return wmat

    ks = jax.random.split(key, 7)
    return {
        "U1": xavier_normal(ks[0], rank[0], core[0]),
        "V1": xavier_normal(ks[1], rank[1], core[1]),
        "W1": xavier_normal(ks[2], rank[2], core[2]),
        "U":  xavier_normal(ks[3], shape[0], rank[0]),
        "V":  xavier_normal(ks[4], shape[1], rank[1]),
        "W":  xavier_normal(ks[5], shape[2], rank[2]),
        "G1": jax.random.uniform(ks[6], (core[0], core[1], core[2]),
                                 jnp.float32, minval=-1.0, maxval=1.0),
    }


if __name__ == "__main__":
    shape = (16, 16, 16)   # embedding rows per mode
    rank = (8, 8, 8)       # d1, d2, d3
    core = (4, 4, 4)       # Tucker core sizes
    B = 8                  # batch of (i, j, k) index triples

    key = jax.random.PRNGKey(0)
    pkey, ik = jax.random.split(key)
    params = make_params(pkey, shape, rank, core)

    ik0, ik1, ik2 = jax.random.split(ik, 3)
    u_idx = jax.random.randint(ik0, (B,), 0, shape[0], dtype=jnp.int32)
    v_idx = jax.random.randint(ik1, (B,), 0, shape[1], dtype=jnp.int32)
    w_idx = jax.random.randint(ik2, (B,), 0, shape[2], dtype=jnp.int32)

    pred = ml2_forward(params, u_idx, v_idx, w_idx)
    pred = jax.block_until_ready(pred)
    assert pred.shape == (B,) and pred.dtype == jnp.float32

    ref = jax.block_until_ready(ml2_forward_ref(params, u_idx, v_idx, w_idx))
    max_err = float(jnp.max(jnp.abs(pred - ref)))
    assert max_err < 2e-3, f"mismatch vs reference: max|diff|={max_err}"

    print("KERNEL_OK")
</pallas_src>

<mosaic_0001>
module attributes {stable_mosaic.version = 11 : i64} {
  func.func @kernel(%arg0: i32, %arg1: memref<8x3xi32, #tpu.memory_space<vmem>>, %arg2: memref<224x16xf32, #tpu.memory_space<vmem>>, %arg3: memref<1x8xf32, #tpu.memory_space<vmem>>) attributes {dimension_semantics = [#tpu.dimension_semantics<arbitrary>], iteration_bounds = array<i64: 1>, scalar_prefetch = 0 : i64, scratch_operands = 0 : i64, tpu.core_type = #tpu.core_type<tc>, window_params = [{pipeline_mode = #tpu.pipeline_mode<synchronous>, transform_indices = @transform_0, window_bounds = array<i64: 8, 3>}, {pipeline_mode = #tpu.pipeline_mode<synchronous>, transform_indices = @transform_1, window_bounds = array<i64: 224, 16>}, {pipeline_mode = #tpu.pipeline_mode<synchronous>, transform_indices = @transform_2, window_bounds = array<i64: 1, 8>}]} {
    %c0 = arith.constant 0 : index
    %c0_0 = arith.constant 0 : index
    %0 = vector.load %arg1[%c0, %c0_0] : memref<8x3xi32, #tpu.memory_space<vmem>>, vector<8x3xi32>
    %c0_1 = arith.constant 0 : index
    %c0_2 = arith.constant 0 : index
    %1 = vector.load %arg2[%c0_1, %c0_2] : memref<224x16xf32, #tpu.memory_space<vmem>>, vector<16x8xf32>
    %2 = vector.extract_strided_slice %0 {offsets = [0, 0], sizes = [8, 1], strides = [1, 1]} : vector<8x3xi32> to vector<8x1xi32>
    %3 = tpu.iota {dimensions = array<i32: 1>} : vector<8x16xi32>
    %4 = vector.broadcast %2 : vector<8x1xi32> to vector<8x16xi32>
    %5 = arith.cmpi eq, %3, %4 : vector<8x16xi32>
    %6 = arith.extui %5 : vector<8x16xi1> to vector<8x16xi32>
    %7 = arith.sitofp %6 : vector<8x16xi32> to vector<8x16xf32>
    %cst = arith.constant dense<0.000000e+00> : vector<8x8xf32>
    %8 = tpu.matmul %7, %1, %cst {dimension_numbers = #tpu.dot_dimension_numbers<[1], [0], [0], [1], [0, 0, 1, 1], [], []>} : vector<8x16xf32>, vector<16x8xf32>, vector<8x8xf32> -> vector<8x8xf32>
    %c16 = arith.constant 16 : index
    %c0_3 = arith.constant 0 : index
    %9 = vector.load %arg2[%c16, %c0_3] : memref<224x16xf32, #tpu.memory_space<vmem>>, vector<16x8xf32>
    %10 = vector.extract_strided_slice %0 {offsets = [0, 1], sizes = [8, 1], strides = [1, 1]} : vector<8x3xi32> to vector<8x1xi32>
    %11 = tpu.iota {dimensions = array<i32: 1>} : vector<8x16xi32>
    %12 = vector.broadcast %10 : vector<8x1xi32> to vector<8x16xi32>
    %13 = arith.cmpi eq, %11, %12 : vector<8x16xi32>
    %14 = arith.extui %13 : vector<8x16xi1> to vector<8x16xi32>
    %15 = arith.sitofp %14 : vector<8x16xi32> to vector<8x16xf32>
    %cst_4 = arith.constant dense<0.000000e+00> : vector<8x8xf32>
    %16 = tpu.matmul %15, %9, %cst_4 {dimension_numbers = #tpu.dot_dimension_numbers<[1], [0], [0], [1], [0, 0, 1, 1], [], []>} : vector<8x16xf32>, vector<16x8xf32>, vector<8x8xf32> -> vector<8x8xf32>
    %c32 = arith.constant 32 : index
    %c0_5 = arith.constant 0 : index
    %17 = vector.load %arg2[%c32, %c0_5] : memref<224x16xf32, #tpu.memory_space<vmem>>, vector<16x8xf32>
    %18 = vector.extract_strided_slice %0 {offsets = [0, 2], sizes = [8, 1], strides = [1, 1]} : vector<8x3xi32> to vector<8x1xi32>
    %19 = tpu.iota {dimensions = array<i32: 1>} : vector<8x16xi32>
    %20 = vector.broadcast %18 : vector<8x1xi32> to vector<8x16xi32>
    %21 = arith.cmpi eq, %19, %20 : vector<8x16xi32>
    %22 = arith.extui %21 : vector<8x16xi1> to vector<8x16xi32>
    %23 = arith.sitofp %22 : vector<8x16xi32> to vector<8x16xf32>
    %cst_6 = arith.constant dense<0.000000e+00> : vector<8x8xf32>
    %24 = tpu.matmul %23, %17, %cst_6 {dimension_numbers = #tpu.dot_dimension_numbers<[1], [0], [0], [1], [0, 0, 1, 1], [], []>} : vector<8x16xf32>, vector<16x8xf32>, vector<8x8xf32> -> vector<8x8xf32>
    %c80 = arith.constant 80 : index
    %c0_7 = arith.constant 0 : index
    %25 = vector.load %arg2[%c80, %c0_7] : memref<224x16xf32, #tpu.memory_space<vmem>>, vector<64x8xf32>
    %c152 = arith.constant 152 : index
    %c0_8 = arith.constant 0 : index
    %26 = vector.load %arg2[%c152, %c0_8] : memref<224x16xf32, #tpu.memory_space<vmem>>, vector<64x8xf32>
    %c48 = arith.constant 48 : index
    %c0_9 = arith.constant 0 : index
    %27 = vector.load %arg2[%c48, %c0_9] : memref<224x16xf32, #tpu.memory_space<vmem>>, vector<8x4xf32>
    %c72 = arith.constant 72 : index
    %c0_10 = arith.constant 0 : index
    %28 = vector.load %arg2[%c72, %c0_10] : memref<224x16xf32, #tpu.memory_space<vmem>>, vector<4x16xf32>
    %cst_11 = arith.constant dense<0.000000e+00> : vector<8x16xf32>
    %29 = tpu.matmul %27, %28, %cst_11 {dimension_numbers = #tpu.dot_dimension_numbers<[1], [0], [0], [1], [0, 0, 1, 1], [], []>} : vector<8x4xf32>, vector<4x16xf32>, vector<8x16xf32> -> vector<8x16xf32>
    %c56 = arith.constant 56 : index
    %c0_12 = arith.constant 0 : index
    %30 = vector.load %arg2[%c56, %c0_12] : memref<224x16xf32, #tpu.memory_space<vmem>>, vector<8x4xf32>
    %cst_13 = arith.constant dense<0.000000e+00> : vector<64x4xf32>
    %31 = tpu.matmul %25, %30, %cst_13 {dimension_numbers = #tpu.dot_dimension_numbers<[1], [0], [0], [1], [0, 0, 1, 1], [], []>} : vector<64x8xf32>, vector<8x4xf32>, vector<64x4xf32> -> vector<64x4xf32>
    %c144 = arith.constant 144 : index
    %c0_14 = arith.constant 0 : index
    %32 = vector.load %arg2[%c144, %c0_14] : memref<224x16xf32, #tpu.memory_space<vmem>>, vector<4x16xf32>
    %cst_15 = arith.constant dense<0.000000e+00> : vector<64x16xf32>
    %33 = tpu.matmul %31, %32, %cst_15 {dimension_numbers = #tpu.dot_dimension_numbers<[1], [0], [0], [1], [0, 0, 1, 1], [], []>} : vector<64x4xf32>, vector<4x16xf32>, vector<64x16xf32> -> vector<64x16xf32>
    %c64 = arith.constant 64 : index
    %c0_16 = arith.constant 0 : index
    %34 = vector.load %arg2[%c64, %c0_16] : memref<224x16xf32, #tpu.memory_space<vmem>>, vector<8x4xf32>
    %cst_17 = arith.constant dense<0.000000e+00> : vector<64x4xf32>
    %35 = tpu.matmul %26, %34, %cst_17 {dimension_numbers = #tpu.dot_dimension_numbers<[1], [0], [0], [1], [0, 0, 1, 1], [], []>} : vector<64x8xf32>, vector<8x4xf32>, vector<64x4xf32> -> vector<64x4xf32>
    %c216 = arith.constant 216 : index
    %c0_18 = arith.constant 0 : index
    %36 = vector.load %arg2[%c216, %c0_18] : memref<224x16xf32, #tpu.memory_space<vmem>>, vector<4x16xf32>
    %cst_19 = arith.constant dense<0.000000e+00> : vector<64x16xf32>
    %37 = tpu.matmul %35, %36, %cst_19 {dimension_numbers = #tpu.dot_dimension_numbers<[1], [0], [0], [1], [0, 0, 1, 1], [], []>} : vector<64x4xf32>, vector<4x16xf32>, vector<64x16xf32> -> vector<64x16xf32>
    %38 = arith.mulf %33, %37 : vector<64x16xf32>
    %cst_20 = arith.constant dense<0.000000e+00> : vector<8x64xf32>
    %39 = tpu.matmul %29, %38, %cst_20 {dimension_numbers = #tpu.dot_dimension_numbers<[1], [1], [0], [0], [0, 0, 1, 0], [], []>} : vector<8x16xf32>, vector<64x16xf32>, vector<8x64xf32> -> vector<8x64xf32>
    %cst_21 = arith.constant dense<0.000000e+00> : vector<8x64xf32>
    %40 = tpu.matmul %8, %39, %cst_21 {dimension_numbers = #tpu.dot_dimension_numbers<[1], [0], [0], [1], [0, 0, 1, 1], [], []>} : vector<8x8xf32>, vector<8x64xf32>, vector<8x64xf32> -> vector<8x64xf32>
    %41 = arith.negf %40 : vector<8x64xf32>
    %42 = math.exp %41 : vector<8x64xf32>
    %cst_22 = arith.constant 1.000000e+00 : f32
    %43 = vector.broadcast %cst_22 : f32 to vector<8x64xf32>
    %44 = arith.addf %43, %42 : vector<8x64xf32>
    %45 = arith.divf %43, %44 : vector<8x64xf32>
    %cst_23 = arith.constant dense<0.000000e+00> : vector<8x64xf32>
    %46 = tpu.matmul %16, %25, %cst_23 {dimension_numbers = #tpu.dot_dimension_numbers<[1], [1], [0], [0], [0, 0, 1, 0], [], []>} : vector<8x8xf32>, vector<64x8xf32>, vector<8x64xf32> -> vector<8x64xf32>
    %47 = arith.mulf %46, %45 : vector<8x64xf32>
    %cst_24 = arith.constant dense<0.000000e+00> : vector<8x8xf32>
    %48 = tpu.matmul %47, %26, %cst_24 {dimension_numbers = #tpu.dot_dimension_numbers<[1], [0], [0], [1], [0, 0, 1, 1], [], []>} : vector<8x64xf32>, vector<64x8xf32>, vector<8x8xf32> -> vector<8x8xf32>
    %49 = arith.negf %48 : vector<8x8xf32>
    %50 = math.exp %49 : vector<8x8xf32>
    %cst_25 = arith.constant 1.000000e+00 : f32
    %51 = vector.broadcast %cst_25 : f32 to vector<8x8xf32>
    %52 = arith.addf %51, %50 : vector<8x8xf32>
    %53 = arith.divf %51, %52 : vector<8x8xf32>
    %54 = arith.mulf %24, %53 : vector<8x8xf32>
    %cst_26 = arith.constant 1.000000e+00 : f32
    %55 = vector.broadcast %cst_26 : f32 to vector<1x8xf32>
    %cst_27 = arith.constant dense<0.000000e+00> : vector<1x8xf32>
    %56 = tpu.matmul %55, %54, %cst_27 {dimension_numbers = #tpu.dot_dimension_numbers<[1], [1], [0], [0], [0, 0, 1, 0], [], []>} : vector<1x8xf32>, vector<8x8xf32>, vector<1x8xf32> -> vector<1x8xf32>
    %c0_28 = arith.constant 0 : index
    %c0_29 = arith.constant 0 : index
    %57 = vector.load %arg3[%c0_28, %c0_29] : memref<1x8xf32, #tpu.memory_space<vmem>>, vector<1x8xf32>
    tpu.vector_store %arg3[%c0_28, %c0_29], %56 {strides = array<i32>} : memref<1x8xf32, #tpu.memory_space<vmem>>, vector<1x8xf32>,
    return
  }
  func.func @transform_0(%arg0: i32) -> (i32, i32) {
    %c0_i32 = arith.constant 0 : i32
    %c0_i32_0 = arith.constant 0 : i32
    %c0_i32_1 = arith.constant 0 : i32
    return %c0_i32, %c0_i32_0 : i32, i32
  }
  func.func @transform_1(%arg0: i32) -> (i32, i32) {
    %c0_i32 = arith.constant 0 : i32
    %c0_i32_0 = arith.constant 0 : i32
    %c0_i32_1 = arith.constant 0 : i32
    return %c0_i32, %c0_i32_0 : i32, i32
  }
  func.func @transform_2(%arg0: i32) -> (i32, i32) {
    %c0_i32 = arith.constant 0 : i32
    %c0_i32_0 = arith.constant 0 : i32
    %c0_i32_1 = arith.constant 0 : i32
    return %c0_i32, %c0_i32_0 : i32, i32
  }
}

</mosaic_0001>

<llo_original>
// kernel: ml2_forward.1
$region0: #{ml2_forward.1}
  #allocation0 [shape = 'u32[]', space=smem, size = 0x4, offset = 0x4, fixed_abs, tag = 'smem constant byte address 0x4 - core index']
  #allocation1 [shape = 'u32[144,128]{1,0:T(1,128)}', space=vmem, size = 0x12000, scoped, tag = 'internal scratch']
  %s0 = inlined_call_operand.vmem [shape: s32[8,3], index: 0, kind: input, shape index: {}]
  %s1 = inlined_call_operand.vmem [shape: f32[224,16], index: 1, kind: input, shape index: {}]
  %s2 = inlined_call_operand.hbm [shape: f32[1,8], index: 2, kind: output, shape index: {}]
  %s3 = sld [smem:[#allocation0]]
  $region18: #{ml2_forward.1} parent=0
    _
  %s5 = ssub.s32 1, %s3
  %s6 = scalar_select 0, %s5, %s3
  $region1: #{ml2_forward.1} parent=0
    #allocation2 [shape = 'u8[512]{0}', space=vmem, size = 0x400, scoped, tag = 'output window, operand 0, single buffered']
    #allocation3 [shape = 's32[1]{0}', space=sflag, size = 0x4, scoped, tag = 'scoped memory for ml2_forward.1']
    %7 = vsyncpa [#allocation3], 0
    // Predicated region
    $region2: #{ml2_forward.1} parent=1 // pred_check
      _
    $region3: #{ml2_forward.1} parent=1 // pred_check_branch
      %9 = sbr.rel (0) target = $region5
    $region4: #{ml2_forward.1} parent=1 // pred_region
      _
    $region5: #{ml2_forward.1} parent=1 // pred_fallthru
      _
    // Predicated region
    $region6: #{ml2_forward.1} parent=1 // pred_check
      _
    $region7: #{ml2_forward.1} parent=1 // pred_check_branch
      %11 = sbr.rel (0) target = $region9
    $region8: #{ml2_forward.1} parent=1 // pred_region
      _
    $region9: #{ml2_forward.1} parent=1 // pred_fallthru
      _
    %v12 = vld [vmem:[%s0] sm:$0xff]
    %v13 = vld [vmem:[%s1] sm:$0xff]
    %v14 = vld [vmem:[%s1 + $0x8] sm:$0xff]
    %v15 = vlaneseq
    %v16 = vand.u32 %v15, 127
    %17 = vset.pattern.permute.xlu0 0
    %18 = vperm.xlu0 %17, %v12
    %v19 = vpop.permute.xlu0 %18
    %vm20 = vcmp.eq.s32.totalorder %v16, %v19
    %v21 = vsel %vm20, 1, 0
    %v22 = vcvt.s32.f32 %v21
    %vm23 = vcmask 130048
    %v25 = vsel %vm23, %v22, 0
    %27 = vmatprep.subr.mxu0 0.0
    %28 = vmatpush1.msra.mxu0 %v13
    %29 = vmatprep.subr.mxu0 0.0
    %30 = vmatpush1.msra.mxu0 %v14
    %31 = vmatprep.subr.mxu0 0.0
    %32 = vmatpush1.msra.mxu0 0.0
    %33 = vmatprep.subr.mxu0 0.0
    %34 = vmatpush1.msra.mxu0 0.0
    %35 = vmatprep.subr.mxu0 0.0
    %36 = vmatpush1.msra.mxu0 0.0
    %37 = vmatprep.subr.mxu0 0.0
    %38 = vmatpush1.msra.mxu0 0.0
    %39 = vmatprep.subr.mxu0 0.0
    %40 = vmatpush1.msra.mxu0 0.0
    %41 = vmatprep.subr.mxu0 0.0
    %42 = vmatpush1.msra.mxu0 0.0
    %43 = vmatprep.subr.mxu0 0.0
    %44 = vmatpush1.msra.mxu0 0.0
    %45 = vmatprep.subr.mxu0 0.0
    %46 = vmatpush1.msra.mxu0 0.0
    %47 = vmatprep.subr.mxu0 0.0
    %48 = vmatpush1.msra.mxu0 0.0
    %49 = vmatprep.subr.mxu0 0.0
    %50 = vmatpush1.msra.mxu0 0.0
    %51 = vmatprep.subr.mxu0 0.0
    %52 = vmatpush1.msra.mxu0 0.0
    %53 = vmatprep.subr.mxu0 0.0
    %54 = vmatpush1.msra.mxu0 0.0
    %55 = vmatprep.subr.mxu0 0.0
    %56 = vmatpush1.msra.mxu0 0.0
    %57 = vmatprep.subr.mxu0 0.0
    %58 = vmatpush1.msra.mxu0 0.0
    %59 = vmatprep.subr.mxu0 0.0
    %60 = vmatpush1.msra.mxu0 0.0
    %61 = vmatprep.subr.mxu0 0.0
    %62 = vmatpush1.msra.mxu0 0.0
    %63 = vmatprep.subr.mxu0 0.0
    %64 = vmatpush1.msra.mxu0 0.0
    %65 = vmatprep.subr.mxu0 0.0
    %66 = vmatpush1.msra.mxu0 0.0
    %67 = vmatprep.subr.mxu0 0.0
    %68 = vmatpush1.msra.mxu0 0.0
    %69 = vmatprep.subr.mxu0 0.0
    %70 = vmatpush1.msra.mxu0 0.0
    %71 = vmatprep.subr.mxu0 0.0
    %72 = vmatpush1.msra.mxu0 0.0
    %73 = vmatprep.subr.mxu0 0.0
    %74 = vmatpush1.msra.mxu0 0.0
    %75 = vmatprep.subr.mxu0 0.0
    %76 = vmatpush1.msra.mxu0 0.0
    %77 = vmatprep.subr.mxu0 0.0
    %78 = vmatpush1.msra.mxu0 0.0
    %79 = vmatprep.subr.mxu0 0.0
    %80 = vmatpush1.msra.mxu0 0.0
    %81 = vmatprep.subr.mxu0 0.0
    %82 = vmatpush1.msra.mxu0 0.0
    %83 = vmatprep.subr.mxu0 0.0
    %84 = vmatpush1.msra.mxu0 0.0
    %85 = vmatprep.subr.mxu0 0.0
    %86 = vmatpush1.msra.mxu0 0.0
    %87 = vmatprep.subr.mxu0 0.0
    %88 = vmatpush1.msra.mxu0 0.0
    %89 = vmatprep.subr.mxu0 0.0
    %90 = vmatpush1.msra.mxu0 0.0
    %91 = vmatprep.mubr.f32.mxu0 0.0
    %92 = vmatmul.mubr.f32.gmra.mrb[0].mxu0 %v25
    %v93 = vpop.f32.mrb[0].mxu0
    %v94 = vadd.f32 0.0, %v93
    %v95 = vpop.f32.mrb[0].mxu0
    %96 = vdwg.mxu0
    %v97 = vld [vmem:[%s1 + $0x10] sm:$0xff]
    %v98 = vld [vmem:[%s1 + $0x18] sm:$0xff]
    %99 = vset.pattern.permute.xlu0 1
    %100 = vperm.xlu0 %99, %v12
    %v101 = vpop.permute.xlu0 %100
    %vm102 = vcmp.eq.s32.totalorder %v16, %v101
    %v103 = vsel %vm102, 1, 0
    %v104 = vcvt.s32.f32 %v103
    %v106 = vsel %vm23, %v104, 0
    %108 = vmatprep.subr.mxu0 0.0
    %109 = vmatpush1.msra.mxu0 %v97
    %110 = vmatprep.subr.mxu0 0.0
    %111 = vmatpush1.msra.mxu0 %v98
    %112 = vmatprep.subr.mxu0 0.0
    %113 = vmatpush1.msra.mxu0 0.0
    %114 = vmatprep.subr.mxu0 0.0
    %115 = vmatpush1.msra.mxu0 0.0
    %116 = vmatprep.subr.mxu0 0.0
    %117 = vmatpush1.msra.mxu0 0.0
    %118 = vmatprep.subr.mxu0 0.0
    %119 = vmatpush1.msra.mxu0 0.0
    %120 = vmatprep.subr.mxu0 0.0
    %121 = vmatpush1.msra.mxu0 0.0
    %122 = vmatprep.subr.mxu0 0.0
    %123 = vmatpush1.msra.mxu0 0.0
    %124 = vmatprep.subr.mxu0 0.0
    %125 = vmatpush1.msra.mxu0 0.0
    %126 = vmatprep.subr.mxu0 0.0
    %127 = vmatpush1.msra.mxu0 0.0
    %128 = vmatprep.subr.mxu0 0.0
    %129 = vmatpush1.msra.mxu0 0.0
    %130 = vmatprep.subr.mxu0 0.0
    %131 = vmatpush1.msra.mxu0 0.0
    %132 = vmatprep.subr.mxu0 0.0
    %133 = vmatpush1.msra.mxu0 0.0
    %134 = vmatprep.subr.mxu0 0.0
    %135 = vmatpush1.msra.mxu0 0.0
    %136 = vmatprep.subr.mxu0 0.0
    %137 = vmatpush1.msra.mxu0 0.0
    %138 = vmatprep.subr.mxu0 0.0
    %139 = vmatpush1.msra.mxu0 0.0
    %140 = vmatprep.subr.mxu0 0.0
    %141 = vmatpush1.msra.mxu0 0.0
    %142 = vmatprep.subr.mxu0 0.0
    %143 = vmatpush1.msra.mxu0 0.0
    %144 = vmatprep.subr.mxu0 0.0
    %145 = vmatpush1.msra.mxu0 0.0
    %146 = vmatprep.subr.mxu0 0.0
    %147 = vmatpush1.msra.mxu0 0.0
    %148 = vmatprep.subr.mxu0 0.0
    %149 = vmatpush1.msra.mxu0 0.0
    %150 = vmatprep.subr.mxu0 0.0
    %151 = vmatpush1.msra.mxu0 0.0
    %152 = vmatprep.subr.mxu0 0.0
    %153 = vmatpush1.msra.mxu0 0.0
    %154 = vmatprep.subr.mxu0 0.0
    %155 = vmatpush1.msra.mxu0 0.0
    %156 = vmatprep.subr.mxu0 0.0
    %157 = vmatpush1.msra.mxu0 0.0
    %158 = vmatprep.subr.mxu0 0.0
    %159 = vmatpush1.msra.mxu0 0.0
    %160 = vmatprep.subr.mxu0 0.0
    %161 = vmatpush1.msra.mxu0 0.0
    %162 = vmatprep.subr.mxu0 0.0
    %163 = vmatpush1.msra.mxu0 0.0
    %164 = vmatprep.subr.mxu0 0.0
    %165 = vmatpush1.msra.mxu0 0.0
    %166 = vmatprep.subr.mxu0 0.0
    %167 = vmatpush1.msra.mxu0 0.0
    %168 = vmatprep.subr.mxu0 0.0
    %169 = vmatpush1.msra.mxu0 0.0
    %170 = vmatprep.subr.mxu0 0.0
    %171 = vmatpush1.msra.mxu0 0.0
    %172 = vmatprep.mubr.f32.mxu0 0.0
    %173 = vmatmul.mubr.f32.gmra.mrb[0].mxu0 %v106
    %v174 = vpop.f32.mrb[0].mxu0
    %v175 = vadd.f32 0.0, %v174
    %v176 = vpop.f32.mrb[0].mxu0
    %177 = vdwg.mxu0
    %v178 = vld [vmem:[%s1 + $0x20] sm:$0xff]
    %v179 = vld [vmem:[%s1 + $0x28] sm:$0xff]
    %180 = vset.pattern.permute.xlu0 2
    %181 = vperm.xlu0 %180, %v12
    %v182 = vpop.permute.xlu0 %181
    %vm183 = vcmp.eq.s32.totalorder %v16, %v182
    %v184 = vsel %vm183, 1, 0
    %v185 = vcvt.s32.f32 %v184
    %v187 = vsel %vm23, %v185, 0
    %189 = vmatprep.subr.mxu0 0.0
    %190 = vmatpush1.msra.mxu0 %v178
    %191 = vmatprep.subr.mxu0 0.0
    %192 = vmatpush1.msra.mxu0 %v179
    %193 = vmatprep.subr.mxu0 0.0
    %194 = vmatpush1.msra.mxu0 0.0
    %195 = vmatprep.subr.mxu0 0.0
    %196 = vmatpush1.msra.mxu0 0.0
    %197 = vmatprep.subr.mxu0 0.0
    %198 = vmatpush1.msra.mxu0 0.0
    %199 = vmatprep.subr.mxu0 0.0
    %200 = vmatpush1.msra.mxu0 0.0
    %201 = vmatprep.subr.mxu0 0.0
    %202 = vmatpush1.msra.mxu0 0.0
    %203 = vmatprep.subr.mxu0 0.0
    %204 = vmatpush1.msra.mxu0 0.0
    %205 = vmatprep.subr.mxu0 0.0
    %206 = vmatpush1.msra.mxu0 0.0
    %207 = vmatprep.subr.mxu0 0.0
    %208 = vmatpush1.msra.mxu0 0.0
    %209 = vmatprep.subr.mxu0 0.0
    %210 = vmatpush1.msra.mxu0 0.0
    %211 = vmatprep.subr.mxu0 0.0
    %212 = vmatpush1.msra.mxu0 0.0
    %213 = vmatprep.subr.mxu0 0.0
    %214 = vmatpush1.msra.mxu0 0.0
    %215 = vmatprep.subr.mxu0 0.0
    %216 = vmatpush1.msra.mxu0 0.0
    %217 = vmatprep.subr.mxu0 0.0
    %218 = vmatpush1.msra.mxu0 0.0
    %219 = vmatprep.subr.mxu0 0.0
    %220 = vmatpush1.msra.mxu0 0.0
    %221 = vmatprep.subr.mxu0 0.0
    %222 = vmatpush1.msra.mxu0 0.0
    %223 = vmatprep.subr.mxu0 0.0
    %224 = vmatpush1.msra.mxu0 0.0
    %225 = vmatprep.subr.mxu0 0.0
    %226 = vmatpush1.msra.mxu0 0.0
    %227 = vmatprep.subr.mxu0 0.0
    %228 = vmatpush1.msra.mxu0 0.0
    %229 = vmatprep.subr.mxu0 0.0
    %230 = vmatpush1.msra.mxu0 0.0
    %231 = vmatprep.subr.mxu0 0.0
    %232 = vmatpush1.msra.mxu0 0.0
    %233 = vmatprep.subr.mxu0 0.0
    %234 = vmatpush1.msra.mxu0 0.0
    %235 = vmatprep.subr.mxu0 0.0
    %236 = vmatpush1.msra.mxu0 0.0
    %237 = vmatprep.subr.mxu0 0.0
    %238 = vmatpush1.msra.mxu0 0.0
    %239 = vmatprep.subr.mxu0 0.0
    %240 = vmatpush1.msra.mxu0 0.0
    %241 = vmatprep.subr.mxu0 0.0
    %242 = vmatpush1.msra.mxu0 0.0
    %243 = vmatprep.subr.mxu0 0.0
    %244 = vmatpush1.msra.mxu0 0.0
    %245 = vmatprep.subr.mxu0 0.0
    %246 = vmatpush1.msra.mxu0 0.0
    %247 = vmatprep.subr.mxu0 0.0
    %248 = vmatpush1.msra.mxu0 0.0
    %249 = vmatprep.subr.mxu0 0.0
    %250 = vmatpush1.msra.mxu0 0.0
    %251 = vmatprep.subr.mxu0 0.0
    %252 = vmatpush1.msra.mxu0 0.0
    %253 = vmatprep.mubr.f32.mxu0 0.0
    %254 = vmatmul.mubr.f32.gmra.mrb[0].mxu0 %v187
    %v255 = vpop.f32.mrb[0].mxu0
    %v256 = vadd.f32 0.0, %v255
    %v257 = vpop.f32.mrb[0].mxu0
    %258 = vdwg.mxu0
    %v259 = vld [vmem:[%s1 + $0x50] sm:$0xff]
    %v260 = vld [vmem:[%s1 + $0x58] sm:$0xff]
    %v261 = vld [vmem:[%s1 + $0x60] sm:$0xff]
    %v262 = vld [vmem:[%s1 + $0x68] sm:$0xff]
    %v263 = vld [vmem:[%s1 + $0x70] sm:$0xff]
    %v264 = vld [vmem:[%s1 + $0x78] sm:$0xff]
    %v265 = vld [vmem:[%s1 + $0x80] sm:$0xff]
    %v266 = vld [vmem:[%s1 + $0x88] sm:$0xff]
    %v267 = vld [vmem:[%s1 + $0x98] sm:$0xff]
    %v268 = vld [vmem:[%s1 + $0xa0] sm:$0xff]
    %v269 = vld [vmem:[%s1 + $0xa8] sm:$0xff]
    %v270 = vld [vmem:[%s1 + $0xb0] sm:$0xff]
    %v271 = vld [vmem:[%s1 + $0xb8] sm:$0xff]
    %v272 = vld [vmem:[%s1 + $0xc0] sm:$0xff]
    %v273 = vld [vmem:[%s1 + $0xc8] sm:$0xff]
    %v274 = vld [vmem:[%s1 + $0xd0] sm:$0xff]
    %v275 = vld [vmem:[%s1 + $0x30] sm:$0xff]
    %v276 = vld [vmem:[%s1 + $0x48] sm:$0xf]
    %vm277 = vcmask 31744
    %v279 = vsel %vm277, %v275, 0
    %vm281 = vcmask 1043456
    %v283 = vsel %vm281, %v276, 0
    %285 = vmatprep.subr.mxu0 0.0
    %286 = vmatpush1.msra.mxu0 %v283
    %287 = vmatprep.subr.mxu0 0.0
    %288 = vmatpush1.msra.mxu0 0.0
    %289 = vmatprep.subr.mxu0 0.0
    %290 = vmatpush1.msra.mxu0 0.0
    %291 = vmatprep.subr.mxu0 0.0
    %292 = vmatpush1.msra.mxu0 0.0
    %293 = vmatprep.subr.mxu0 0.0
    %294 = vmatpush1.msra.mxu0 0.0
    %295 = vmatprep.subr.mxu0 0.0
    %296 = vmatpush1.msra.mxu0 0.0
    %297 = vmatprep.subr.mxu0 0.0
    %298 = vmatpush1.msra.mxu0 0.0
    %299 = vmatprep.subr.mxu0 0.0
    %300 = vmatpush1.msra.mxu0 0.0
    %301 = vmatprep.subr.mxu0 0.0
    %302 = vmatpush1.msra.mxu0 0.0
    %303 = vmatprep.subr.mxu0 0.0
    %304 = vmatpush1.msra.mxu0 0.0
    %305 = vmatprep.subr.mxu0 0.0
    %306 = vmatpush1.msra.mxu0 0.0
    %307 = vmatprep.subr.mxu0 0.0
    %308 = vmatpush1.msra.mxu0 0.0
    %309 = vmatprep.subr.mxu0 0.0
    %310 = vmatpush1.msra.mxu0 0.0
    %311 = vmatprep.subr.mxu0 0.0
    %312 = vmatpush1.msra.mxu0 0.0
    %313 = vmatprep.subr.mxu0 0.0
    %314 = vmatpush1.msra.mxu0 0.0
    %315 = vmatprep.subr.mxu0 0.0
    %316 = vmatpush1.msra.mxu0 0.0
    %317 = vmatprep.subr.mxu0 0.0
    %318 = vmatpush1.msra.mxu0 0.0
    %319 = vmatprep.subr.mxu0 0.0
    %320 = vmatpush1.msra.mxu0 0.0
    %321 = vmatprep.subr.mxu0 0.0
    %322 = vmatpush1.msra.mxu0 0.0
    %323 = vmatprep.subr.mxu0 0.0
    %324 = vmatpush1.msra.mxu0 0.0
    %325 = vmatprep.subr.mxu0 0.0
    %326 = vmatpush1.msra.mxu0 0.0
    %327 = vmatprep.subr.mxu0 0.0
    %328 = vmatpush1.msra.mxu0 0.0
    %329 = vmatprep.subr.mxu0 0.0
    %330 = vmatpush1.msra.mxu0 0.0
    %331 = vmatprep.subr.mxu0 0.0
    %332 = vmatpush1.msra.mxu0 0.0
    %333 = vmatprep.subr.mxu0 0.0
    %334 = vmatpush1.msra.mxu0 0.0
    %335 = vmatprep.subr.mxu0 0.0
    %336 = vmatpush1.msra.mxu0 0.0
    %337 = vmatprep.subr.mxu0 0.0
    %338 = vmatpush1.msra.mxu0 0.0
    %339 = vmatprep.subr.mxu0 0.0
    %340 = vmatpush1.msra.mxu0 0.0
    %341 = vmatprep.subr.mxu0 0.0
    %342 = vmatpush1.msra.mxu0 0.0
    %343 = vmatprep.subr.mxu0 0.0
    %344 = vmatpush1.msra.mxu0 0.0
    %345 = vmatprep.subr.mxu0 0.0
    %346 = vmatpush1.msra.mxu0 0.0
    %347 = vmatprep.subr.mxu0 0.0
    %348 = vmatpush1.msra.mxu0 0.0
    %349 = vmatprep.mubr.f32.mxu0 0.0
    %350 = vmatmul.mubr.f32.gmra.mrb[0].mxu0 %v279
    %v351 = vpop.f32.mrb[0].mxu0
    %v352 = vadd.f32 0.0, %v351
    %v353 = vpop.f32.mrb[0].mxu0
    %354 = vdwg.mxu0
    %v355 = vld [vmem:[%s1 + $0x38] sm:$0xff]
    %vm356 = vcmask 64512
    %v358 = vsel %vm356, %v259, 0
    %v361 = vsel %vm356, %v260, 0
    %v364 = vsel %vm356, %v261, 0
    %v367 = vsel %vm356, %v262, 0
    %v370 = vsel %vm356, %v263, 0
    %v373 = vsel %vm356, %v264, 0
    %v376 = vsel %vm356, %v265, 0
    %v379 = vsel %vm356, %v266, 0
    %381 = vmatprep.subr.mxu0 0.0
    %382 = vmatpush1.msra.mxu0 %v355
    %383 = vmatprep.subr.mxu0 0.0
    %384 = vmatpush1.msra.mxu0 0.0
    %385 = vmatprep.subr.mxu0 0.0
    %386 = vmatpush1.msra.mxu0 0.0
    %387 = vmatprep.subr.mxu0 0.0
    %388 = vmatpush1.msra.mxu0 0.0
    %389 = vmatprep.subr.mxu0 0.0
    %390 = vmatpush1.msra.mxu0 0.0
    %391 = vmatprep.subr.mxu0 0.0
    %392 = vmatpush1.msra.mxu0 0.0
    %393 = vmatprep.subr.mxu0 0.0
    %394 = vmatpush1.msra.mxu0 0.0
    %395 = vmatprep.subr.mxu0 0.0
    %396 = vmatpush1.msra.mxu0 0.0
    %397 = vmatprep.subr.mxu0 0.0
    %398 = vmatpush1.msra.mxu0 0.0
    %399 = vmatprep.subr.mxu0 0.0
    %400 = vmatpush1.msra.mxu0 0.0
    %401 = vmatprep.subr.mxu0 0.0
    %402 = vmatpush1.msra.mxu0 0.0
    %403 = vmatprep.subr.mxu0 0.0
    %404 = vmatpush1.msra.mxu0 0.0
    %405 = vmatprep.subr.mxu0 0.0
    %406 = vmatpush1.msra.mxu0 0.0
    %407 = vmatprep.subr.mxu0 0.0
    %408 = vmatpush1.msra.mxu0 0.0
    %409 = vmatprep.subr.mxu0 0.0
    %410 = vmatpush1.msra.mxu0 0.0
    %411 = vmatprep.subr.mxu0 0.0
    %412 = vmatpush1.msra.mxu0 0.0
    %413 = vmatprep.subr.mxu0 0.0
    %414 = vmatpush1.msra.mxu0 0.0
    %415 = vmatprep.subr.mxu0 0.0
    %416 = vmatpush1.msra.mxu0 0.0
    %417 = vmatprep.subr.mxu0 0.0
    %418 = vmatpush1.msra.mxu0 0.0
    %419 = vmatprep.subr.mxu0 0.0
    %420 = vmatpush1.msra.mxu0 0.0
    %421 = vmatprep.subr.mxu0 0.0
    %422 = vmatpush1.msra.mxu0 0.0
    %423 = vmatprep.subr.mxu0 0.0
    %424 = vmatpush1.msra.mxu0 0.0
    %425 = vmatprep.subr.mxu0 0.0
    %426 = vmatpush1.msra.mxu0 0.0
    %427 = vmatprep.subr.mxu0 0.0
    %428 = vmatpush1.msra.mxu0 0.0
    %429 = vmatprep.subr.mxu0 0.0
    %430 = vmatpush1.msra.mxu0 0.0
    %431 = vmatprep.subr.mxu0 0.0
    %432 = vmatpush1.msra.mxu0 0.0
    %433 = vmatprep.subr.mxu0 0.0
    %434 = vmatpush1.msra.mxu0 0.0
    %435 = vmatprep.subr.mxu0 0.0
    %436 = vmatpush1.msra.mxu0 0.0
    %437 = vmatprep.subr.mxu0 0.0
    %438 = vmatpush1.msra.mxu0 0.0
    %439 = vmatprep.subr.mxu0 0.0
    %440 = vmatpush1.msra.mxu0 0.0
    %441 = vmatprep.subr.mxu0 0.0
    %442 = vmatpush1.msra.mxu0 0.0
    %443 = vmatprep.subr.mxu0 0.0
    %444 = vmatpush1.msra.mxu0 0.0
    %445 = vmatprep.mubr.f32.mxu0 0.0
    %446 = vmatmul.mubr.f32.gmra.mrb[0].mxu0 %v358
    %v447 = vpop.f32.mrb[0].mxu0
    %v448 = vadd.f32 0.0, %v447
    %v449 = vpop.f32.mrb[0].mxu0
    %450 = vmatprep.mubr.f32.mxu0 0.0
    %451 = vmatmul.mubr.f32.gmra.mrb[0].mxu0 %v361
    %v452 = vpop.f32.mrb[0].mxu0
    %v453 = vadd.f32 0.0, %v452
    %v454 = vpop.f32.mrb[0].mxu0
    %455 = vmatprep.mubr.f32.mxu0 0.0
    %456 = vmatmul.mubr.f32.gmra.mrb[0].mxu0 %v364
    %v457 = vpop.f32.mrb[0].mxu0
    %v458 = vadd.f32 0.0, %v457
    %v459 = vpop.f32.mrb[0].mxu0
    %460 = vmatprep.mubr.f32.mxu0 0.0
    %461 = vmatmul.mubr.f32.gmra.mrb[0].mxu0 %v367
    %v462 = vpop.f32.mrb[0].mxu0
    %v463 = vadd.f32 0.0, %v462
    %v464 = vpop.f32.mrb[0].mxu0
    %465 = vmatprep.mubr.f32.mxu0 0.0
    %466 = vmatmul.mubr.f32.gmra.mrb[0].mxu0 %v370
    %v467 = vpop.f32.mrb[0].mxu0
    %v468 = vadd.f32 0.0, %v467
    %v469 = vpop.f32.mrb[0].mxu0
    %470 = vmatprep.mubr.f32.mxu0 0.0
    %471 = vmatmul.mubr.f32.gmra.mrb[0].mxu0 %v373
    %v472 = vpop.f32.mrb[0].mxu0
    %v473 = vadd.f32 0.0, %v472
    %v474 = vpop.f32.mrb[0].mxu0
    %475 = vmatprep.mubr.f32.mxu0 0.0
    %476 = vmatmul.mubr.f32.gmra.mrb[0].mxu0 %v376
    %v477 = vpop.f32.mrb[0].mxu0
    %v478 = vadd.f32 0.0, %v477
    %v479 = vpop.f32.mrb[0].mxu0
    %480 = vmatprep.mubr.f32.mxu0 0.0
    %481 = vmatmul.mubr.f32.gmra.mrb[0].mxu0 %v379
    %v482 = vpop.f32.mrb[0].mxu0
    %v483 = vadd.f32 0.0, %v482
    %v484 = vpop.f32.mrb[0].mxu0
    %485 = vdwg.mxu0
    %v486 = vld [vmem:[%s1 + $0x90] sm:$0xf]
    %v488 = vsel %vm277, %v448, 0
    %v491 = vsel %vm277, %v453, 0
    %v494 = vsel %vm277, %v458, 0
    %v497 = vsel %vm277, %v463, 0
    %v500 = vsel %vm277, %v468, 0
    %v503 = vsel %vm277, %v473, 0
    %v506 = vsel %vm277, %v478, 0
    %v509 = vsel %vm277, %v483, 0
    %v512 = vsel %vm281, %v486, 0
    %514 = vmatprep.subr.mxu0 0.0
    %515 = vmatpush1.msra.mxu0 %v512
    %516 = vmatprep.subr.mxu0 0.0
    %517 = vmatpush1.msra.mxu0 0.0
    %518 = vmatprep.subr.mxu0 0.0
    %519 = vmatpush1.msra.mxu0 0.0
    %520 = vmatprep.subr.mxu0 0.0
    %521 = vmatpush1.msra.mxu0 0.0
    %522 = vmatprep.subr.mxu0 0.0
    %523 = vmatpush1.msra.mxu0 0.0
    %524 = vmatprep.subr.mxu0 0.0
    %525 = vmatpush1.msra.mxu0 0.0
    %526 = vmatprep.subr.mxu0 0.0
    %527 = vmatpush1.msra.mxu0 0.0
    %528 = vmatprep.subr.mxu0 0.0
    %529 = vmatpush1.msra.mxu0 0.0
    %530 = vmatprep.subr.mxu0 0.0
    %531 = vmatpush1.msra.mxu0 0.0
    %532 = vmatprep.subr.mxu0 0.0
    %533 = vmatpush1.msra.mxu0 0.0
    %534 = vmatprep.subr.mxu0 0.0
    %535 = vmatpush1.msra.mxu0 0.0
    %536 = vmatprep.subr.mxu0 0.0
    %537 = vmatpush1.msra.mxu0 0.0
    %538 = vmatprep.subr.mxu0 0.0
    %539 = vmatpush1.msra.mxu0 0.0
    %540 = vmatprep.subr.mxu0 0.0
    %541 = vmatpush1.msra.mxu0 0.0
    %542 = vmatprep.subr.mxu0 0.0
    %543 = vmatpush1.msra.mxu0 0.0
    %544 = vmatprep.subr.mxu0 0.0
    %545 = vmatpush1.msra.mxu0 0.0
    %546 = vmatprep.subr.mxu0 0.0
    %547 = vmatpush1.msra.mxu0 0.0
    %548 = vmatprep.subr.mxu0 0.0
    %549 = vmatpush1.msra.mxu0 0.0
    %550 = vmatprep.subr.mxu0 0.0
    %551 = vmatpush1.msra.mxu0 0.0
    %552 = vmatprep.subr.mxu0 0.0
    %553 = vmatpush1.msra.mxu0 0.0
    %554 = vmatprep.subr.mxu0 0.0
    %555 = vmatpush1.msra.mxu0 0.0
    %556 = vmatprep.subr.mxu0 0.0
    %557 = vmatpush1.msra.mxu0 0.0
    %558 = vmatprep.subr.mxu0 0.0
    %559 = vmatpush1.msra.mxu0 0.0
    %560 = vmatprep.subr.mxu0 0.0
    %561 = vmatpush1.msra.mxu0 0.0
    %562 = vmatprep.subr.mxu0 0.0
    %563 = vmatpush1.msra.mxu0 0.0
    %564 = vmatprep.subr.mxu0 0.0
    %565 = vmatpush1.msra.mxu0 0.0
    %566 = vmatprep.subr.mxu0 0.0
    %567 = vmatpush1.msra.mxu0 0.0
    %568 = vmatprep.subr.mxu0 0.0
    %569 = vmatpush1.msra.mxu0 0.0
    %570 = vmatprep.subr.mxu0 0.0
    %571 = vmatpush1.msra.mxu0 0.0
    %572 = vmatprep.subr.mxu0 0.0
    %573 = vmatpush1.msra.mxu0 0.0
    %574 = vmatprep.subr.mxu0 0.0
    %575 = vmatpush1.msra.mxu0 0.0
    %576 = vmatprep.subr.mxu0 0.0
    %577 = vmatpush1.msra.mxu0 0.0
    %578 = vmatprep.mubr.f32.mxu0 0.0
    %579 = vmatmul.mubr.f32.gmra.mrb[0].mxu0 %v488
    %v580 = vpop.f32.mrb[0].mxu0
    %v581 = vadd.f32 0.0, %v580
    %v582 = vpop.f32.mrb[0].mxu0
    %583 = vmatprep.mubr.f32.mxu0 0.0
    %584 = vmatmul.mubr.f32.gmra.mrb[0].mxu0 %v491
    %v585 = vpop.f32.mrb[0].mxu0
    %v586 = vadd.f32 0.0, %v585
    %v587 = vpop.f32.mrb[0].mxu0
    %588 = vmatprep.mubr.f32.mxu0 0.0
    %589 = vmatmul.mubr.f32.gmra.mrb[0].mxu0 %v494
    %v590 = vpop.f32.mrb[0].mxu0
    %v591 = vadd.f32 0.0, %v590
    %v592 = vpop.f32.mrb[0].mxu0
    %593 = vmatprep.mubr.f32.mxu0 0.0
    %594 = vmatmul.mubr.f32.gmra.mrb[0].mxu0 %v497
    %v595 = vpop.f32.mrb[0].mxu0
    %v596 = vadd.f32 0.0, %v595
    %v597 = vpop.f32.mrb[0].mxu0
    %598 = vmatprep.mubr.f32.mxu0 0.0
    %599 = vmatmul.mubr.f32.gmra.mrb[0].mxu0 %v500
    %v600 = vpop.f32.mrb[0].mxu0
    %v601 = vadd.f32 0.0, %v600
    %v602 = vpop.f32.mrb[0].mxu0
    %603 = vmatprep.mubr.f32.mxu0 0.0
    %604 = vmatmul.mubr.f32.gmra.mrb[0].mxu0 %v503
    %v605 = vpop.f32.mrb[0].mxu0
    %v606 = vadd.f32 0.0, %v605
    %v607 = vpop.f32.mrb[0].mxu0
    %608 = vmatprep.mubr.f32.mxu0 0.0
    %609 = vmatmul.mubr.f32.gmra.mrb[0].mxu0 %v506
    %v610 = vpop.f32.mrb[0].mxu0
    %v611 = vadd.f32 0.0, %v610
    %v612 = vpop.f32.mrb[0].mxu0
    %613 = vmatprep.mubr.f32.mxu0 0.0
    %614 = vmatmul.mubr.f32.gmra.mrb[0].mxu0 %v509
    %v615 = vpop.f32.mrb[0].mxu0
    %v616 = vadd.f32 0.0, %v615
    %v617 = vpop.f32.mrb[0].mxu0
    %618 = vdwg.mxu0
    %v619 = vld [vmem:[%s1 + $0x40] sm:$0xff]
    %v621 = vsel %vm356, %v267, 0
    %v624 = vsel %vm356, %v268, 0
    %v627 = vsel %vm356, %v269, 0
    %v630 = vsel %vm356, %v270, 0
    %v633 = vsel %vm356, %v271, 0
    %v636 = vsel %vm356, %v272, 0
    %v639 = vsel %vm356, %v273, 0
    %v642 = vsel %vm356, %v274, 0
    %644 = vmatprep.subr.mxu0 0.0
    %645 = vmatpush1.msra.mxu0 %v619
    %646 = vmatprep.subr.mxu0 0.0
    %647 = vmatpush1.msra.mxu0 0.0
    %648 = vmatprep.subr.mxu0 0.0
    %649 = vmatpush1.msra.mxu0 0.0
    %650 = vmatprep.subr.mxu0 0.0
    %651 = vmatpush1.msra.mxu0 0.0
    %652 = vmatprep.subr.mxu0 0.0
    %653 = vmatpush1.msra.mxu0 0.0
    %654 = vmatprep.subr.mxu0 0.0
    %655 = vmatpush1.msra.mxu0 0.0
    %656 = vmatprep.subr.mxu0 0.0
    %657 = vmatpush1.msra.mxu0 0.0
    %658 = vmatprep.subr.mxu0 0.0
    %659 = vmatpush1.msra.mxu0 0.0
    %660 = vmatprep.subr.mxu0 0.0
    %661 = vmatpush1.msra.mxu0 0.0
    %662 = vmatprep.subr.mxu0 0.0
    %663 = vmatpush1.msra.mxu0 0.0
    %664 = vmatprep.subr.mxu0 0.0
    %665 = vmatpush1.msra.mxu0 0.0
    %666 = vmatprep.subr.mxu0 0.0
    %667 = vmatpush1.msra.mxu0 0.0
    %668 = vmatprep.subr.mxu0 0.0
    %669 = vmatpush1.msra.mxu0 0.0
    %670 = vmatprep.subr.mxu0 0.0
    %671 = vmatpush1.msra.mxu0 0.0
    %672 = vmatprep.subr.mxu0 0.0
    %673 = vmatpush1.msra.mxu0 0.0
    %674 = vmatprep.subr.mxu0 0.0
    %675 = vmatpush1.msra.mxu0 0.0
    %676 = vmatprep.subr.mxu0 0.0
    %677 = vmatpush1.msra.mxu0 0.0
    %678 = vmatprep.subr.mxu0 0.0
    %679 = vmatpush1.msra.mxu0 0.0
    %680 = vmatprep.subr.mxu0 0.0
    %681 = vmatpush1.msra.mxu0 0.0
    %682 = vmatprep.subr.mxu0 0.0
    %683 = vmatpush1.msra.mxu0 0.0
    %684 = vmatprep.subr.mxu0 0.0
    %685 = vmatpush1.msra.mxu0 0.0
    %686 = vmatprep.subr.mxu0 0.0
    %687 = vmatpush1.msra.mxu0 0.0
    %688 = vmatprep.subr.mxu0 0.0
    %689 = vmatpush1.msra.mxu0 0.0
    %690 = vmatprep.subr.mxu0 0.0
    %691 = vmatpush1.msra.mxu0 0.0
    %692 = vmatprep.subr.mxu0 0.0
    %693 = vmatpush1.msra.mxu0 0.0
    %694 = vmatprep.subr.mxu0 0.0
    %695 = vmatpush1.msra.mxu0 0.0
    %696 = vmatprep.subr.mxu0 0.0
    %697 = vmatpush1.msra.mxu0 0.0
    %698 = vmatprep.subr.mxu0 0.0
    %699 = vmatpush1.msra.mxu0 0.0
    %700 = vmatprep.subr.mxu0 0.0
    %701 = vmatpush1.msra.mxu0 0.0
    %702 = vmatprep.subr.mxu0 0.0
    %703 = vmatpush1.msra.mxu0 0.0
    %704 = vmatprep.subr.mxu0 0.0
    %705 = vmatpush1.msra.mxu0 0.0
    %706 = vmatprep.subr.mxu0 0.0
    %707 = vmatpush1.msra.mxu0 0.0
    %708 = vmatprep.mubr.f32.mxu0 0.0
    %709 = vmatmul.mubr.f32.gmra.mrb[0].mxu0 %v621
    %v710 = vpop.f32.mrb[0].mxu0
    %v711 = vadd.f32 0.0, %v710
    %v712 = vpop.f32.mrb[0].mxu0
    %713 = vmatprep.mubr.f32.mxu0 0.0
    %714 = vmatmul.mubr.f32.gmra.mrb[0].mxu0 %v624
    %v715 = vpop.f32.mrb[0].mxu0
    %v716 = vadd.f32 0.0, %v715
    %v717 = vpop.f32.mrb[0].mxu0
    %718 = vmatprep.mubr.f32.mxu0 0.0
    %719 = vmatmul.mubr.f32.gmra.mrb[0].mxu0 %v627
    %v720 = vpop.f32.mrb[0].mxu0
    %v721 = vadd.f32 0.0, %v720
    %v722 = vpop.f32.mrb[0].mxu0
    %723 = vmatprep.mubr.f32.mxu0 0.0
    %724 = vmatmul.mubr.f32.gmra.mrb[0].mxu0 %v630
    %v725 = vpop.f32.mrb[0].mxu0
    %v726 = vadd.f32 0.0, %v725
    %v727 = vpop.f32.mrb[0].mxu0
    %728 = vmatprep.mubr.f32.mxu0 0.0
    %729 = vmatmul.mubr.f32.gmra.mrb[0].mxu0 %v633
    %v730 = vpop.f32.mrb[0].mxu0
    %v731 = vadd.f32 0.0, %v730
    %v732 = vpop.f32.mrb[0].mxu0
    %733 = vmatprep.mubr.f32.mxu0 0.0
    %734 = vmatmul.mubr.f32.gmra.mrb[0].mxu0 %v636
    %v735 = vpop.f32.mrb[0].mxu0
    %v736 = vadd.f32 0.0, %v735
    %v737 = vpop.f32.mrb[0].mxu0
    %738 = vmatprep.mubr.f32.mxu0 0.0
    %739 = vmatmul.mubr.f32.gmra.mrb[0].mxu0 %v639
    %v740 = vpop.f32.mrb[0].mxu0
    %v741 = vadd.f32 0.0, %v740
    %v742 = vpop.f32.mrb[0].mxu0
    %743 = vmatprep.mubr.f32.mxu0 0.0
    %744 = vmatmul.mubr.f32.gmra.mrb[0].mxu0 %v642
    %v745 = vpop.f32.mrb[0].mxu0
    %v746 = vadd.f32 0.0, %v745
    %v747 = vpop.f32.mrb[0].mxu0
    %748 = vdwg.mxu0
    %v749 = vld [vmem:[%s1 + $0xd8] sm:$0xf]
    %v751 = vsel %vm277, %v711, 0
    %v754 = vsel %vm277, %v716, 0
    %v757 = vsel %vm277, %v721, 0
    %v760 = vsel %vm277, %v726, 0
    %v763 = vsel %vm277, %v731, 0
    %v766 = vsel %vm277, %v736, 0
    %v769 = vsel %vm277, %v741, 0
    %v772 = vsel %vm277, %v746, 0
    %v775 = vsel %vm281, %v749, 0
    %777 = vmatprep.subr.mxu0 0.0
    %778 = vmatpush1.msra.mxu0 %v775
    %779 = vmatprep.subr.mxu0 0.0
    %780 = vmatpush1.msra.mxu0 0.0
    %781 = vmatprep.subr.mxu0 0.0
    %782 = vmatpush1.msra.mxu0 0.0
    %783 = vmatprep.subr.mxu0 0.0
    %784 = vmatpush1.msra.mxu0 0.0
    %785 = vmatprep.subr.mxu0 0.0
    %786 = vmatpush1.msra.mxu0 0.0
    %787 = vmatprep.subr.mxu0 0.0
    %788 = vmatpush1.msra.mxu0 0.0
    %789 = vmatprep.subr.mxu0 0.0
    %790 = vmatpush1.msra.mxu0 0.0
    %791 = vmatprep.subr.mxu0 0.0
    %792 = vmatpush1.msra.mxu0 0.0
    %793 = vmatprep.subr.mxu0 0.0
    %794 = vmatpush1.msra.mxu0 0.0
    %795 = vmatprep.subr.mxu0 0.0
    %796 = vmatpush1.msra.mxu0 0.0
    %797 = vmatprep.subr.mxu0 0.0
    %798 = vmatpush1.msra.mxu0 0.0
    %799 = vmatprep.subr.mxu0 0.0
    %800 = vmatpush1.msra.mxu0 0.0
    %801 = vmatprep.subr.mxu0 0.0
    %802 = vmatpush1.msra.mxu0 0.0
    %803 = vmatprep.subr.mxu0 0.0
    %804 = vmatpush1.msra.mxu0 0.0
    %805 = vmatprep.subr.mxu0 0.0
    %806 = vmatpush1.msra.mxu0 0.0
    %807 = vmatprep.subr.mxu0 0.0
    %808 = vmatpush1.msra.mxu0 0.0
    %809 = vmatprep.subr.mxu0 0.0
    %810 = vmatpush1.msra.mxu0 0.0
    %811 = vmatprep.subr.mxu0 0.0
    %812 = vmatpush1.msra.mxu0 0.0
    %813 = vmatprep.subr.mxu0 0.0
    %814 = vmatpush1.msra.mxu0 0.0
    %815 = vmatprep.subr.mxu0 0.0
    %816 = vmatpush1.msra.mxu0 0.0
    %817 = vmatprep.subr.mxu0 0.0
    %818 = vmatpush1.msra.mxu0 0.0
    %819 = vmatprep.subr.mxu0 0.0
    %820 = vmatpush1.msra.mxu0 0.0
    %821 = vmatprep.subr.mxu0 0.0
    %822 = vmatpush1.msra.mxu0 0.0
    %823 = vmatprep.subr.mxu0 0.0
    %824 = vmatpush1.msra.mxu0 0.0
    %825 = vmatprep.subr.mxu0 0.0
    %826 = vmatpush1.msra.mxu0 0.0
    %827 = vmatprep.subr.mxu0 0.0
    %828 = vmatpush1.msra.mxu0 0.0
    %829 = vmatprep.subr.mxu0 0.0
    %830 = vmatpush1.msra.mxu0 0.0
    %831 = vmatprep.subr.mxu0 0.0
    %832 = vmatpush1.msra.mxu0 0.0
    %833 = vmatprep.subr.mxu0 0.0
    %834 = vmatpush1.msra.mxu0 0.0
    %835 = vmatprep.subr.mxu0 0.0
    %836 = vmatpush1.msra.mxu0 0.0
    %837 = vmatprep.subr.mxu0 0.0
    %838 = vmatpush1.msra.mxu0 0.0
    %839 = vmatprep.subr.mxu0 0.0
    %840 = vmatpush1.msra.mxu0 0.0
    %841 = vmatprep.mubr.f32.mxu0 0.0
    %842 = vmatmul.mubr.f32.gmra.mrb[0].mxu0 %v751
    %v843 = vpop.f32.mrb[0].mxu0
    %v844 = vadd.f32 0.0, %v843
    %v845 = vpop.f32.mrb[0].mxu0
    %846 = vmatprep.mubr.f32.mxu0 0.0
    %847 = vmatmul.mubr.f32.gmra.mrb[0].mxu0 %v754
    %v848 = vpop.f32.mrb[0].mxu0
    %v849 = vadd.f32 0.0, %v848
    %v850 = vpop.f32.mrb[0].mxu0
    %851 = vmatprep.mubr.f32.mxu0 0.0
    %852 = vmatmul.mubr.f32.gmra.mrb[0].mxu0 %v757
    %v853 = vpop.f32.mrb[0].mxu0
    %v854 = vadd.f32 0.0, %v853
    %v855 = vpop.f32.mrb[0].mxu0
    %856 = vmatprep.mubr.f32.mxu0 0.0
    %857 = vmatmul.mubr.f32.gmra.mrb[0].mxu0 %v760
    %v858 = vpop.f32.mrb[0].mxu0
    %v859 = vadd.f32 0.0, %v858
    %v860 = vpop.f32.mrb[0].mxu0
    %861 = vmatprep.mubr.f32.mxu0 0.0
    %862 = vmatmul.mubr.f32.gmra.mrb[0].mxu0 %v763
    %v863 = vpop.f32.mrb[0].mxu0
    %v864 = vadd.f32 0.0, %v863
    %v865 = vpop.f32.mrb[0].mxu0
    %866 = vmatprep.mubr.f32.mxu0 0.0
    %867 = vmatmul.mubr.f32.gmra.mrb[0].mxu0 %v766
    %v868 = vpop.f32.mrb[0].mxu0
    %v869 = vadd.f32 0.0, %v868
    %v870 = vpop.f32.mrb[0].mxu0
    %871 = vmatprep.mubr.f32.mxu0 0.0
    %872 = vmatmul.mubr.f32.gmra.mrb[0].mxu0 %v769
    %v873 = vpop.f32.mrb[0].mxu0
    %v874 = vadd.f32 0.0, %v873
    %v875 = vpop.f32.mrb[0].mxu0
    %876 = vmatprep.mubr.f32.mxu0 0.0
    %877 = vmatmul.mubr.f32.gmra.mrb[0].mxu0 %v772
    %v878 = vpop.f32.mrb[0].mxu0
    %v879 = vadd.f32 0.0, %v878
    %v880 = vpop.f32.mrb[0].mxu0
    %881 = vdwg.mxu0
    %v882 = vmul.f32 %v581, %v844
    %v883 = vmul.f32 %v586, %v849
    %v884 = vmul.f32 %v591, %v854
    %v885 = vmul.f32 %v596, %v859
    %v886 = vmul.f32 %v601, %v864
    %v887 = vmul.f32 %v606, %v869
    %v888 = vmul.f32 %v611, %v874
    %v889 = vmul.f32 %v616, %v879
    %v891 = vsel %vm23, %v352, 0
    %v894 = vsel %vm23, %v882, 0
    %v897 = vsel %vm23, %v883, 0
    %v900 = vsel %vm23, %v884, 0
    %v903 = vsel %vm23, %v885, 0
    %v906 = vsel %vm23, %v886, 0
    %v909 = vsel %vm23, %v887, 0
    %v912 = vsel %vm23, %v888, 0
    %v915 = vsel %vm23, %v889, 0
    %917 = vmatprep.subr.mxu0 0.0
    %918 = vmatpush1.xpose.msra.mxu0 %v894
    %919 = vmatprep.subr.mxu0 0.0
    %920 = vmatpush1.xpose.msra.mxu0 %v897
    %921 = vmatprep.subr.mxu0 0.0
    %922 = vmatpush1.xpose.msra.mxu0 %v900
    %923 = vmatprep.subr.mxu0 0.0
    %924 = vmatpush1.xpose.msra.mxu0 %v903
    %925 = vmatprep.subr.mxu0 0.0
    %926 = vmatpush1.xpose.msra.mxu0 %v906
    %927 = vmatprep.subr.mxu0 0.0
    %928 = vmatpush1.xpose.msra.mxu0 %v909
    %929 = vmatprep.subr.mxu0 0.0
    %930 = vmatpush1.xpose.msra.mxu0 %v912
    %931 = vmatprep.subr.mxu0 0.0
    %932 = vmatpush1.xpose.msra.mxu0 %v915
    %933 = vmatprep.subr.mxu0 0.0
    %934 = vmatpush1.xpose.msra.mxu0 0.0
    %935 = vmatprep.subr.mxu0 0.0
    %936 = vmatpush1.xpose.msra.mxu0 0.0
    %937 = vmatprep.subr.mxu0 0.0
    %938 = vmatpush1.xpose.msra.mxu0 0.0
    %939 = vmatprep.subr.mxu0 0.0
    %940 = vmatpush1.xpose.msra.mxu0 0.0
    %941 = vmatprep.subr.mxu0 0.0
    %942 = vmatpush1.xpose.msra.mxu0 0.0
    %943 = vmatprep.subr.mxu0 0.0
    %944 = vmatpush1.xpose.msra.mxu0 0.0
    %945 = vmatprep.subr.mxu0 0.0
    %946 = vmatpush1.xpose.msra.mxu0 0.0
    %947 = vmatprep.subr.mxu0 0.0
    %948 = vmatpush1.xpose.msra.mxu0 0.0
    %949 = vmatprep.subr.mxu0 0.0
    %950 = vmatpush1.xpose.msra.mxu0 0.0
    %951 = vmatprep.subr.mxu0 0.0
    %952 = vmatpush1.xpose.msra.mxu0 0.0
    %953 = vmatprep.subr.mxu0 0.0
    %954 = vmatpush1.xpose.msra.mxu0 0.0
    %955 = vmatprep.subr.mxu0 0.0
    %956 = vmatpush1.xpose.msra.mxu0 0.0
    %957 = vmatprep.subr.mxu0 0.0
    %958 = vmatpush1.xpose.msra.mxu0 0.0
    %959 = vmatprep.subr.mxu0 0.0
    %960 = vmatpush1.xpose.msra.mxu0 0.0
    %961 = vmatprep.subr.mxu0 0.0
    %962 = vmatpush1.xpose.msra.mxu0 0.0
    %963 = vmatprep.subr.mxu0 0.0
    %964 = vmatpush1.xpose.msra.mxu0 0.0
    %965 = vmatprep.subr.mxu0 0.0
    %966 = vmatpush1.xpose.msra.mxu0 0.0
    %967 = vmatprep.subr.mxu0 0.0
    %968 = vmatpush1.xpose.msra.mxu0 0.0
    %969 = vmatprep.subr.mxu0 0.0
    %970 = vmatpush1.xpose.msra.mxu0 0.0
    %971 = vmatprep.subr.mxu0 0.0
    %972 = vmatpush1.xpose.msra.mxu0 0.0
    %973 = vmatprep.subr.mxu0 0.0
    %974 = vmatpush1.xpose.msra.mxu0 0.0
    %975 = vmatprep.subr.mxu0 0.0
    %976 = vmatpush1.xpose.msra.mxu0 0.0
    %977 = vmatprep.subr.mxu0 0.0
    %978 = vmatpush1.xpose.msra.mxu0 0.0
    %979 = vmatprep.subr.mxu0 0.0
    %980 = vmatpush1.xpose.msra.mxu0 0.0
    %981 = vmatprep.mubr.f32.mxu0 0.0
    %982 = vmatmul.mubr.f32.gmra.mrb[0].mxu0 %v891
    %v983 = vpop.f32.mrb[0].mxu0
    %v984 = vadd.f32 0.0, %v983
    %v985 = vpop.f32.mrb[0].mxu0
    %986 = vdwg.mxu0
    %v988 = vsel %vm356, %v94, 0
    %990 = vmatprep.subr.mxu0 0.0
    %991 = vmatpush1.msra.mxu0 %v984
    %992 = vmatprep.subr.mxu0 0.0
    %993 = vmatpush1.msra.mxu0 0.0
    %994 = vmatprep.subr.mxu0 0.0
    %995 = vmatpush1.msra.mxu0 0.0
    %996 = vmatprep.subr.mxu0 0.0
    %997 = vmatpush1.msra.mxu0 0.0
    %998 = vmatprep.subr.mxu0 0.0
    %999 = vmatpush1.msra.mxu0 0.0
    %1000 = vmatprep.subr.mxu0 0.0
    %1001 = vmatpush1.msra.mxu0 0.0
    %1002 = vmatprep.subr.mxu0 0.0
    %1003 = vmatpush1.msra.mxu0 0.0
    %1004 = vmatprep.subr.mxu0 0.0
    %1005 = vmatpush1.msra.mxu0 0.0
    %1006 = vmatprep.subr.mxu0 0.0
    %1007 = vmatpush1.msra.mxu0 0.0
    %1008 = vmatprep.subr.mxu0 0.0
    %1009 = vmatpush1.msra.mxu0 0.0
    %1010 = vmatprep.subr.mxu0 0.0
    %1011 = vmatpush1.msra.mxu0 0.0
    %1012 = vmatprep.subr.mxu0 0.0
    %1013 = vmatpush1.msra.mxu0 0.0
    %1014 = vmatprep.subr.mxu0 0.0
    %1015 = vmatpush1.msra.mxu0 0.0
    %1016 = vmatprep.subr.mxu0 0.0
    %1017 = vmatpush1.msra.mxu0 0.0
    %1018 = vmatprep.subr.mxu0 0.0
    %1019 = vmatpush1.msra.mxu0 0.0
    %1020 = vmatprep.subr.mxu0 0.0
    %1021 = vmatpush1.msra.mxu0 0.0
    %1022 = vmatprep.subr.mxu0 0.0
    %1023 = vmatpush1.msra.mxu0 0.0
    %1024 = vmatprep.subr.mxu0 0.0
    %1025 = vmatpush1.msra.mxu0 0.0
    %1026 = vmatprep.subr.mxu0 0.0
    %1027 = vmatpush1.msra.mxu0 0.0
    %1028 = vmatprep.subr.mxu0 0.0
    %1029 = vmatpush1.msra.mxu0 0.0
    %1030 = vmatprep.subr.mxu0 0.0
    %1031 = vmatpush1.msra.mxu0 0.0
    %1032 = vmatprep.subr.mxu0 0.0
    %1033 = vmatpush1.msra.mxu0 0.0
    %1034 = vmatprep.subr.mxu0 0.0
    %1035 = vmatpush1.msra.mxu0 0.0
    %1036 = vmatprep.subr.mxu0 0.0
    %1037 = vmatpush1.msra.mxu0 0.0
    %1038 = vmatprep.subr.mxu0 0.0
    %1039 = vmatpush1.msra.mxu0 0.0
    %1040 = vmatprep.subr.mxu0 0.0
    %1041 = vmatpush1.msra.mxu0 0.0
    %1042 = vmatprep.subr.mxu0 0.0
    %1043 = vmatpush1.msra.mxu0 0.0
    %1044 = vmatprep.subr.mxu0 0.0
    %1045 = vmatpush1.msra.mxu0 0.0
    %1046 = vmatprep.subr.mxu0 0.0
    %1047 = vmatpush1.msra.mxu0 0.0
    %1048 = vmatprep.subr.mxu0 0.0
    %1049 = vmatpush1.msra.mxu0 0.0
    %1050 = vmatprep.subr.mxu0 0.0
    %1051 = vmatpush1.msra.mxu0 0.0
    %1052 = vmatprep.subr.mxu0 0.0
    %1053 = vmatpush1.msra.mxu0 0.0
    %1054 = vmatprep.mubr.f32.mxu0 0.0
    %1055 = vmatmul.mubr.f32.gmra.mrb[0].mxu0 %v988
    %v1056 = vpop.f32.mrb[0].mxu0
    %v1057 = vadd.f32 0.0, %v1056
    %v1058 = vpop.f32.mrb[0].mxu0
    %1059 = vdwg.mxu0
    %v1060 = vxor.u32 %v1057, 2147483648
    %v1061 = vmul.f32 %v1060, 1.442695
    %v1062 = vpow.pop %v1061
    %v1063 = vadd.f32 %v1062, 1.0
    %v1064 = vrcp.pop %v1063
    %v1065 = vmul.f32 1.0, %v1064
    %v1067 = vsel %vm356, %v175, 0
    %1069 = vmatprep.subr.mxu0 0.0
    %1070 = vmatpush1.xpose.msra.mxu0 %v358
    %1071 = vmatprep.subr.mxu0 0.0
    %1072 = vmatpush1.xpose.msra.mxu0 %v361
    %1073 = vmatprep.subr.mxu0 0.0
    %1074 = vmatpush1.xpose.msra.mxu0 %v364
    %1075 = vmatprep.subr.mxu0 0.0
    %1076 = vmatpush1.xpose.msra.mxu0 %v367
    %1077 = vmatprep.subr.mxu0 0.0
    %1078 = vmatpush1.xpose.msra.mxu0 %v370
    %1079 = vmatprep.subr.mxu0 0.0
    %1080 = vmatpush1.xpose.msra.mxu0 %v373
    %1081 = vmatprep.subr.mxu0 0.0
    %1082 = vmatpush1.xpose.msra.mxu0 %v376
    %1083 = vmatprep.subr.mxu0 0.0
    %1084 = vmatpush1.xpose.msra.mxu0 %v379
    %1085 = vmatprep.subr.mxu0 0.0
    %1086 = vmatpush1.xpose.msra.mxu0 0.0
    %1087 = vmatprep.subr.mxu0 0.0
    %1088 = vmatpush1.xpose.msra.mxu0 0.0
    %1089 = vmatprep.subr.mxu0 0.0
    %1090 = vmatpush1.xpose.msra.mxu0 0.0
    %1091 = vmatprep.subr.mxu0 0.0
    %1092 = vmatpush1.xpose.msra.mxu0 0.0
    %1093 = vmatprep.subr.mxu0 0.0
    %1094 = vmatpush1.xpose.msra.mxu0 0.0
    %1095 = vmatprep.subr.mxu0 0.0
    %1096 = vmatpush1.xpose.msra.mxu0 0.0
    %1097 = vmatprep.subr.mxu0 0.0
    %1098 = vmatpush1.xpose.msra.mxu0 0.0
    %1099 = vmatprep.subr.mxu0 0.0
    %1100 = vmatpush1.xpose.msra.mxu0 0.0
    %1101 = vmatprep.subr.mxu0 0.0
    %1102 = vmatpush1.xpose.msra.mxu0 0.0
    %1103 = vmatprep.subr.mxu0 0.0
    %1104 = vmatpush1.xpose.msra.mxu0 0.0
    %1105 = vmatprep.subr.mxu0 0.0
    %1106 = vmatpush1.xpose.msra.mxu0 0.0
    %1107 = vmatprep.subr.mxu0 0.0
    %1108 = vmatpush1.xpose.msra.mxu0 0.0
    %1109 = vmatprep.subr.mxu0 0.0
    %1110 = vmatpush1.xpose.msra.mxu0 0.0
    %1111 = vmatprep.subr.mxu0 0.0
    %1112 = vmatpush1.xpose.msra.mxu0 0.0
    %1113 = vmatprep.subr.mxu0 0.0
    %1114 = vmatpush1.xpose.msra.mxu0 0.0
    %1115 = vmatprep.subr.mxu0 0.0
    %1116 = vmatpush1.xpose.msra.mxu0 0.0
    %1117 = vmatprep.subr.mxu0 0.0
    %1118 = vmatpush1.xpose.msra.mxu0 0.0
    %1119 = vmatprep.subr.mxu0 0.0
    %1120 = vmatpush1.xpose.msra.mxu0 0.0
    %1121 = vmatprep.subr.mxu0 0.0
    %1122 = vmatpush1.xpose.msra.mxu0 0.0
    %1123 = vmatprep.subr.mxu0 0.0
    %1124 = vmatpush1.xpose.msra.mxu0 0.0
    %1125 = vmatprep.subr.mxu0 0.0
    %1126 = vmatpush1.xpose.msra.mxu0 0.0
    %1127 = vmatprep.subr.mxu0 0.0
    %1128 = vmatpush1.xpose.msra.mxu0 0.0
    %1129 = vmatprep.subr.mxu0 0.0
    %1130 = vmatpush1.xpose.msra.mxu0 0.0
    %1131 = vmatprep.subr.mxu0 0.0
    %1132 = vmatpush1.xpose.msra.mxu0 0.0
    %1133 = vmatprep.mubr.f32.mxu0 0.0
    %1134 = vmatmul.mubr.f32.gmra.mrb[0].mxu0 %v1067
    %v1135 = vpop.f32.mrb[0].mxu0
    %v1136 = vadd.f32 0.0, %v1135
    %v1137 = vpop.f32.mrb[0].mxu0
    %1138 = vdwg.mxu0
    %v1139 = vmul.f32 %v1136, %v1065
    %vm1140 = vcmask 523264
    %v1142 = vsel %vm1140, %v1139, 0
    %1144 = vmatprep.subr.mxu0 0.0
    %1145 = vmatpush1.msra.mxu0 %v267
    %1146 = vmatprep.subr.mxu0 0.0
    %1147 = vmatpush1.msra.mxu0 %v268
    %1148 = vmatprep.subr.mxu0 0.0
    %1149 = vmatpush1.msra.mxu0 %v269
    %1150 = vmatprep.subr.mxu0 0.0
    %1151 = vmatpush1.msra.mxu0 %v270
    %1152 = vmatprep.subr.mxu0 0.0
    %1153 = vmatpush1.msra.mxu0 %v271
    %1154 = vmatprep.subr.mxu0 0.0
    %1155 = vmatpush1.msra.mxu0 %v272
    %1156 = vmatprep.subr.mxu0 0.0
    %1157 = vmatpush1.msra.mxu0 %v273
    %1158 = vmatprep.subr.mxu0 0.0
    %1159 = vmatpush1.msra.mxu0 %v274
    %1160 = vmatprep.subr.mxu0 0.0
    %1161 = vmatpush1.msra.mxu0 0.0
    %1162 = vmatprep.subr.mxu0 0.0
    %1163 = vmatpush1.msra.mxu0 0.0
    %1164 = vmatprep.subr.mxu0 0.0
    %1165 = vmatpush1.msra.mxu0 0.0
    %1166 = vmatprep.subr.mxu0 0.0
    %1167 = vmatpush1.msra.mxu0 0.0
    %1168 = vmatprep.subr.mxu0 0.0
    %1169 = vmatpush1.msra.mxu0 0.0
    %1170 = vmatprep.subr.mxu0 0.0
    %1171 = vmatpush1.msra.mxu0 0.0
    %1172 = vmatprep.subr.mxu0 0.0
    %1173 = vmatpush1.msra.mxu0 0.0
    %1174 = vmatprep.subr.mxu0 0.0
    %1175 = vmatpush1.msra.mxu0 0.0
    %1176 = vmatprep.subr.mxu0 0.0
    %1177 = vmatpush1.msra.mxu0 0.0
    %1178 = vmatprep.subr.mxu0 0.0
    %1179 = vmatpush1.msra.mxu0 0.0
    %1180 = vmatprep.subr.mxu0 0.0
    %1181 = vmatpush1.msra.mxu0 0.0
    %1182 = vmatprep.subr.mxu0 0.0
    %1183 = vmatpush1.msra.mxu0 0.0
    %1184 = vmatprep.subr.mxu0 0.0
    %1185 = vmatpush1.msra.mxu0 0.0
    %1186 = vmatprep.subr.mxu0 0.0
    %1187 = vmatpush1.msra.mxu0 0.0
    %1188 = vmatprep.subr.mxu0 0.0
    %1189 = vmatpush1.msra.mxu0 0.0
    %1190 = vmatprep.subr.mxu0 0.0
    %1191 = vmatpush1.msra.mxu0 0.0
    %1192 = vmatprep.subr.mxu0 0.0
    %1193 = vmatpush1.msra.mxu0 0.0
    %1194 = vmatprep.subr.mxu0 0.0
    %1195 = vmatpush1.msra.mxu0 0.0
    %1196 = vmatprep.subr.mxu0 0.0
    %1197 = vmatpush1.msra.mxu0 0.0
    %1198 = vmatprep.subr.mxu0 0.0
    %1199 = vmatpush1.msra.mxu0 0.0
    %1200 = vmatprep.subr.mxu0 0.0
    %1201 = vmatpush1.msra.mxu0 0.0
    %1202 = vmatprep.subr.mxu0 0.0
    %1203 = vmatpush1.msra.mxu0 0.0
    %1204 = vmatprep.subr.mxu0 0.0
    %1205 = vmatpush1.msra.mxu0 0.0
    %1206 = vmatprep.subr.mxu0 0.0
    %1207 = vmatpush1.msra.mxu0 0.0
    %1208 = vmatprep.mubr.f32.mxu0 0.0
    %1209 = vmatmul.mubr.f32.gmra.mrb[0].mxu0 %v1142
    %v1210 = vpop.f32.mrb[0].mxu0
    %v1211 = vadd.f32 0.0, %v1210
    %v1212 = vpop.f32.mrb[0].mxu0
    %1213 = vdwg.mxu0
    %v1214 = vxor.u32 %v1211, 2147483648
    %v1215 = vmul.f32 %v1214, 1.442695
    %v1216 = vpow.pop %v1215
    %v1217 = vadd.f32 %v1216, 1.0
    %v1218 = vrcp.pop %v1217
    %v1219 = vmul.f32 1.0, %v1218
    %v1220 = vmul.f32 %v256, %v1219
    %v1222 = vsel %vm356, 1.0, 0
    %v1225 = vsel %vm356, %v1220, 0
    %1227 = vmatprep.subr.mxu0 0.0
    %1228 = vmatpush1.xpose.msra.mxu0 %v1225
    %1229 = vmatprep.subr.mxu0 0.0
    %1230 = vmatpush1.xpose.msra.mxu0 0.0
    %1231 = vmatprep.subr.mxu0 0.0
    %1232 = vmatpush1.xpose.msra.mxu0 0.0
    %1233 = vmatprep.subr.mxu0 0.0
    %1234 = vmatpush1.xpose.msra.mxu0 0.0
    %1235 = vmatprep.subr.mxu0 0.0
    %1236 = vmatpush1.xpose.msra.mxu0 0.0
    %1237 = vmatprep.subr.mxu0 0.0
    %1238 = vmatpush1.xpose.msra.mxu0 0.0
    %1239 = vmatprep.subr.mxu0 0.0
    %1240 = vmatpush1.xpose.msra.mxu0 0.0
    %1241 = vmatprep.subr.mxu0 0.0
    %1242 = vmatpush1.xpose.msra.mxu0 0.0
    %1243 = vmatprep.subr.mxu0 0.0
    %1244 = vmatpush1.xpose.msra.mxu0 0.0
    %1245 = vmatprep.subr.mxu0 0.0
    %1246 = vmatpush1.xpose.msra.mxu0 0.0
    %1247 = vmatprep.subr.mxu0 0.0
    %1248 = vmatpush1.xpose.msra.mxu0 0.0
    %1249 = vmatprep.subr.mxu0 0.0
    %1250 = vmatpush1.xpose.msra.mxu0 0.0
    %1251 = vmatprep.subr.mxu0 0.0
    %1252 = vmatpush1.xpose.msra.mxu0 0.0
    %1253 = vmatprep.subr.mxu0 0.0
    %1254 = vmatpush1.xpose.msra.mxu0 0.0
    %1255 = vmatprep.subr.mxu0 0.0
    %1256 = vmatpush1.xpose.msra.mxu0 0.0
    %1257 = vmatprep.subr.mxu0 0.0
    %1258 = vmatpush1.xpose.msra.mxu0 0.0
    %1259 = vmatprep.subr.mxu0 0.0
    %1260 = vmatpush1.xpose.msra.mxu0 0.0
    %1261 = vmatprep.subr.mxu0 0.0
    %1262 = vmatpush1.xpose.msra.mxu0 0.0
    %1263 = vmatprep.subr.mxu0 0.0
    %1264 = vmatpush1.xpose.msra.mxu0 0.0
    %1265 = vmatprep.subr.mxu0 0.0
    %1266 = vmatpush1.xpose.msra.mxu0 0.0
    %1267 = vmatprep.subr.mxu0 0.0
    %1268 = vmatpush1.xpose.msra.mxu0 0.0
    %1269 = vmatprep.subr.mxu0 0.0
    %1270 = vmatpush1.xpose.msra.mxu0 0.0
    %1271 = vmatprep.subr.mxu0 0.0
    %1272 = vmatpush1.xpose.msra.mxu0 0.0
    %1273 = vmatprep.subr.mxu0 0.0
    %1274 = vmatpush1.xpose.msra.mxu0 0.0
    %1275 = vmatprep.subr.mxu0 0.0
    %1276 = vmatpush1.xpose.msra.mxu0 0.0
    %1277 = vmatprep.subr.mxu0 0.0
    %1278 = vmatpush1.xpose.msra.mxu0 0.0
    %1279 = vmatprep.subr.mxu0 0.0
    %1280 = vmatpush1.xpose.msra.mxu0 0.0
    %1281 = vmatprep.subr.mxu0 0.0
    %1282 = vmatpush1.xpose.msra.mxu0 0.0
    %1283 = vmatprep.subr.mxu0 0.0
    %1284 = vmatpush1.xpose.msra.mxu0 0.0
    %1285 = vmatprep.subr.mxu0 0.0
    %1286 = vmatpush1.xpose.msra.mxu0 0.0
    %1287 = vmatprep.subr.mxu0 0.0
    %1288 = vmatpush1.xpose.msra.mxu0 0.0
    %1289 = vmatprep.subr.mxu0 0.0
    %1290 = vmatpush1.xpose.msra.mxu0 0.0
    %1291 = vmatprep.mubr.f32.mxu0 0.0
    %1292 = vmatmul.mubr.f32.gmra.mrb[0].mxu0 %v1222
    %v1293 = vpop.f32.mrb[0].mxu0
    %v1294 = vadd.f32 0.0, %v1293
    %v1295 = vpop.f32.mrb[0].mxu0
    %1296 = vdwg.mxu0
    %vm1297 = vcmask 57344
    %1298 = vst.msk [vmem:[#allocation2] sm:$0x1] %vm1297, %v1294
    // Predicated region
    $region10: #{ml2_forward.1} parent=1 // pred_check
      _
    $region11: #{ml2_forward.1} parent=1 // pred_check_branch
      %1300 = sbr.rel (0) target = $region13
    $region12: #{ml2_forward.1} parent=1 // pred_region
      %s1302 = ssub.s32 16, 16
      %1303 = vsyncadd [#allocation3], %s1302
      %s1305 = sshll.u32 [#allocation2], 4
      %s1306 = int_to_ptr.vmem [resolvable:$true] %s1305
      %1308 = dma.vmem_to_hbm [thread:$0]  %s1306, 16, %s2, [#allocation3]
    $region13: #{ml2_forward.1} parent=1 // pred_fallthru
      _
    // Predicated region
    $region14: #{ml2_forward.1} parent=1 // pred_check
      _
    $region15: #{ml2_forward.1} parent=1 // pred_check_branch
      %1310 = sbr.rel (0) target = $region17
    $region16: #{ml2_forward.1} parent=1 // pred_region
      %1311 = dma.done [#allocation3], 16
    $region17: #{ml2_forward.1} parent=1 // pred_fallthru
      _
    %1312 = vsyncpa [#allocation3], 1

</llo_original>
